<compile_context>
chip_gen: v7x
topology: tpu7x:2x2x1
jax: 0.10.0
libtpu: 0.0.40
codegen_flags: <defaults>
</compile_context>

<pallas_src>
import functools

import jax
import jax.numpy as jnp
from jax.experimental import pallas as pl
from jax.experimental.pallas import tpu as pltpu


def _round_up(x, m):
    return ((x + m - 1) // m) * m


def _pick_tk(n_pad, tk_req):
    """Neighbor (contraction) tile: a multiple of 128 that divides n_pad, else one full step."""
    if n_pad <= tk_req:
        return n_pad
    cand = (min(tk_req, n_pad) // 128) * 128
    while cand >= 128:
        if n_pad % cand == 0:
            return cand
        cand -= 128
    return n_pad


def _default_vmem_limit():
    cap = 64 * 1024 * 1024          # conservative fallback (v7x physical VMEM)
    try:
        info = pltpu.get_tpu_info()
        cap = int(getattr(info, "vmem_capacity_bytes", cap))
    except Exception:
        pass
    return min(100 * 1024 * 1024, (cap * 3) // 4)   # ~96 MiB on v5e/v6e, ~48 MiB on v7x


def _star_graphconv_kernel(adj_ref, xaug_ref, xself_ref, w1_ref, w2_ref, b_ref,
                           *rest, c, drop_rate, keep_threshold):
    if drop_rate > 0.0:
        rbits_ref, o_ref, acc_ref = rest
    else:
        o_ref, acc_ref = rest

    k = pl.program_id(1)

    @pl.when(k == 0)
    def _():
        acc_ref[...] = jnp.zeros_like(acc_ref)

    # --- neighbor-sum + degree in one bf16 MXU pass: acc += A_blk @ [X | 1]_blk ----
    # int8 {0,1} -> bf16 is exact; the cast touches only the small (tm, tk) tile.
    a_blk = adj_ref[...].astype(jnp.bfloat16)
    acc_ref[...] += jnp.dot(a_blk, xaug_ref[...],
                            preferred_element_type=jnp.float32)

    @pl.when(k == pl.num_programs(1) - 1)
    def _():
        agg = acc_ref[...]                              # [tm, C+1] f32
        nbr_sum = agg[:, :c]                            # [tm, C]
        deg = agg[:, c:c + 1]                           # [tm, 1]
        inv_deg = jnp.where(deg > 0.0, 1.0 / deg, 0.0)  # isolated nodes -> 0
        x_nbr = nbr_sum * inv_deg                       # mean aggregation

        # theta(cat([X, X_nbr])) without a lane concat:  X @ W1 + X_nbr @ W2 + b
        y = (jnp.dot(xself_ref[...], w1_ref[...], preferred_element_type=jnp.float32)
             + jnp.dot(x_nbr, w2_ref[...], preferred_element_type=jnp.float32)
             + b_ref[...])

        # ReLU
        y = jnp.maximum(y, 0.0)

        # inverted dropout (training mode); keep test in integer domain on uint8 bits.
        if drop_rate > 0.0:
            keep = rbits_ref[...].astype(jnp.int32) >= keep_threshold
            y = jnp.where(keep, y * jnp.float32(1.0 / (1.0 - drop_rate)), 0.0)

        o_ref[...] = y.astype(o_ref.dtype)


def star_graphconv(x, adj, w, b, dropout_key, *, drop_rate=0.5, tm=256, tk=512):
    """x: [N, C] f32, adj: [N, N] (0/1), w: [F, 2C] (PyTorch Linear layout), b: [F]."""
    N, C = x.shape
    F = w.shape[0]
    assert w.shape == (F, 2 * C)
    assert adj.shape == (N, N)
    assert 0.0 <= drop_rate < 1.0, "drop_rate must be < 1 (scale 1/(1-p) would be inf)"

    # --- tile / padding choices --------------------------------------------------
    tm = max(32, min(_round_up(int(tm), 32), _round_up(N, 32)))   # row tile (int8-sublane aligned)
    n_pad = _round_up(N, tm)                                      # padded node count
    tk = _pick_tk(n_pad, int(tk))                                 # neighbor (contraction) tile
    f_pad = _round_up(F, 128)                                     # lane-dense output width
    grid = (n_pad // tm, n_pad // tk)

    # --- host-side prep (zero padding => padded nodes are isolated) ---------------
    x_p = jnp.zeros((n_pad, C), jnp.float32).at[:N, :].set(x.astype(jnp.float32))
    adj_p = jnp.zeros((n_pad, n_pad), jnp.int8).at[:N, :N].set(adj.astype(jnp.int8))
    # [X | 1] in bf16: one MXU pass yields neighbor-sum and degree together.
    x_aug = jnp.concatenate(
        [x_p, jnp.ones((n_pad, 1), jnp.float32)], axis=1).astype(jnp.bfloat16)

    w1_p = jnp.zeros((C, f_pad), jnp.float32).at[:, :F].set(w[:, :C].T.astype(jnp.float32))
    w2_p = jnp.zeros((C, f_pad), jnp.float32).at[:, :F].set(w[:, C:].T.astype(jnp.float32))
    b_p = jnp.zeros((1, f_pad), jnp.float32).at[0, :F].set(b.astype(jnp.float32))

    # 8-bit keep threshold: P(drop) == keep_threshold / 256 (quantized to 1/256).
    keep_threshold = max(0, min(255, int(round(float(drop_rate) * 256.0))))
    kernel = functools.partial(_star_graphconv_kernel, c=C,
                               drop_rate=float(drop_rate),
                               keep_threshold=keep_threshold)

    # (pipeline_mode=pl.Buffered(1) on the constant-index specs would shave a little
    #  VMEM; omitted for portability -- weights/bias are tiny relative to the budget.)
    in_specs = [
        pl.BlockSpec((tm, tk), lambda i, k: (i, k)),        # adjacency tile, int8
        pl.BlockSpec((tk, C + 1), lambda i, k: (k, 0)),     # [X | 1] K-tile, bf16
        pl.BlockSpec((tm, C), lambda i, k: (i, 0)),         # self features (resident over k)
        pl.BlockSpec((C, f_pad), lambda i, k: (0, 0)),      # W1
        pl.BlockSpec((C, f_pad), lambda i, k: (0, 0)),      # W2
        pl.BlockSpec((1, f_pad), lambda i, k: (0, 0)),      # bias
    ]
    args = [adj_p, x_aug, x_p, w1_p, w2_p, b_p]

    if drop_rate > 0.0:
        # Per-row-tile random byte stream (uint8: 4x less HBM than uint32); the block
        # index only depends on i, so it is DMA'd once per row tile, not per K step.
        rbits = jax.random.bits(dropout_key, (n_pad, f_pad), dtype=jnp.uint8)
        in_specs.append(pl.BlockSpec((tm, f_pad), lambda i, k: (i, 0)))
        args.append(rbits)

    flops = 2 * n_pad * n_pad * (C + 1) + 2 * (2 * n_pad * C * f_pad)
    bytes_accessed = (adj_p.size * 1                               # int8 adjacency
                      + grid[0] * n_pad * (C + 1) * 2              # bf16 [X|1], refetched per row tile
                      + x_p.size * 4 + (w1_p.size + w2_p.size + b_p.size) * 4
                      + n_pad * f_pad * 4
                      + (n_pad * f_pad if drop_rate > 0.0 else 0))

    out = pl.pallas_call(
        kernel,
        out_shape=jax.ShapeDtypeStruct((n_pad, f_pad), jnp.float32),
        grid=grid,
        in_specs=in_specs,
        out_specs=pl.BlockSpec((tm, f_pad), lambda i, k: (i, 0)),
        scratch_shapes=[pltpu.VMEM((tm, C + 1), jnp.float32)],     # f32 accumulator
        compiler_params=pltpu.CompilerParams(
            dimension_semantics=("parallel", "arbitrary"),         # rows parallel, K reduction
            vmem_limit_bytes=_default_vmem_limit()),
        cost_estimate=pl.CostEstimate(flops=flops, transcendentals=0,
                                      bytes_accessed=bytes_accessed),
    )(*args)

    return out[:N, :F]


if __name__ == "__main__":
    key = jax.random.PRNGKey(0)
    k_x, k_a, k_w, k_b, k_drop = jax.random.split(key, 5)

    N = 200              # number of graph nodes (n_pad=256 -> 4 row tiles x 2 K tiles)
    C_IN = 16            # in_channels
    C_OUT = 32           # out_channels
    DROP = 0.5
    TM, TK = 64, 128

    # node features
    x = jax.random.normal(k_x, (N, C_IN), dtype=jnp.float32)

    # deterministic symmetric adjacency, no self-loops
    a_rand = jax.random.uniform(k_a, (N, N))
    adj = (a_rand < 0.2).astype(jnp.float32)
    adj = jnp.maximum(adj, adj.T)
    adj = adj * (1.0 - jnp.eye(N, dtype=jnp.float32))

    # theta = nn.Linear(2*C_IN, C_OUT, bias=True): PyTorch default init
    fan_in = 2 * C_IN
    bound = 1.0 / (fan_in ** 0.5)
    w = jax.random.uniform(k_w, (C_OUT, 2 * C_IN),
                           minval=-bound, maxval=bound, dtype=jnp.float32)
    b = jax.random.uniform(k_b, (C_OUT,),
                           minval=-bound, maxval=bound, dtype=jnp.float32)

    # --- correctness check against a pure-JAX reference (dropout disabled) -------
    deg = adj.sum(axis=1, keepdims=True)
    x_nbr_ref = (adj @ x) * jnp.where(deg > 0.0, 1.0 / deg, 0.0)
    y_ref = jnp.maximum(jnp.concatenate([x, x_nbr_ref], axis=1) @ w.T + b, 0.0)
    out_nodrop = star_graphconv(x, adj, w, b, k_drop, drop_rate=0.0, tm=TM, tk=TK)
    jax.block_until_ready(out_nodrop)
    assert out_nodrop.shape == (N, C_OUT)
    assert bool(jnp.allclose(out_nodrop, y_ref, atol=5e-2, rtol=5e-2))

    # --- training-mode forward (ReLU + inverted dropout) --------------------------
    out = star_graphconv(x, adj, w, b, k_drop, drop_rate=DROP, tm=TM, tk=TK)
    jax.block_until_ready(out)
    assert out.shape == (N, C_OUT)
    assert bool(jnp.all(jnp.isfinite(out)))
    print("KERNEL_OK")
</pallas_src>

<mosaic_0001>
module attributes {stable_mosaic.version = 11 : i64} {
  func.func @_star_graphconv_kernel(%arg0: i32, %arg1: i32, %arg2: memref<64x128xi8, #tpu.memory_space<vmem>>, %arg3: memref<128x17xbf16, #tpu.memory_space<vmem>>, %arg4: memref<64x16xf32, #tpu.memory_space<vmem>>, %arg5: memref<16x128xf32, #tpu.memory_space<vmem>>, %arg6: memref<16x128xf32, #tpu.memory_space<vmem>>, %arg7: memref<1x128xf32, #tpu.memory_space<vmem>>, %arg8: memref<64x128xf32, #tpu.memory_space<vmem>>, %arg9: memref<64x17xf32, #tpu.memory_space<vmem>>) attributes {dimension_semantics = [#tpu.dimension_semantics<parallel>, #tpu.dimension_semantics<arbitrary>], iteration_bounds = array<i64: 4, 2>, scalar_prefetch = 0 : i64, scratch_operands = 1 : i64, tpu.core_type = #tpu.core_type<tc>, window_params = [{transform_indices = @transform_0, window_bounds = array<i64: 64, 128>}, {transform_indices = @transform_1, window_bounds = array<i64: 128, 17>}, {transform_indices = @transform_2, window_bounds = array<i64: 64, 16>}, {pipeline_mode = #tpu.pipeline_mode<synchronous>, transform_indices = @transform_3, window_bounds = array<i64: 16, 128>}, {pipeline_mode = #tpu.pipeline_mode<synchronous>, transform_indices = @transform_4, window_bounds = array<i64: 16, 128>}, {pipeline_mode = #tpu.pipeline_mode<synchronous>, transform_indices = @transform_5, window_bounds = array<i64: 1, 128>}, {transform_indices = @transform_6, window_bounds = array<i64: 64, 128>}]} {
    %c0_i32 = arith.constant 0 : i32
    %0 = arith.cmpi eq, %arg1, %c0_i32 : i32
    %1 = arith.extui %0 : i1 to i32
    %c0_i32_0 = arith.constant 0 : i32
    %2 = arith.cmpi ne, %1, %c0_i32_0 : i32
    scf.if %2 {
      %cst_9 = arith.constant 0.000000e+00 : f32
      %13 = vector.broadcast %cst_9 : f32 to vector<64x17xf32>
      %c0_10 = arith.constant 0 : index
      %c0_11 = arith.constant 0 : index
      %14 = vector.load %arg9[%c0_10, %c0_11] : memref<64x17xf32, #tpu.memory_space<vmem>>, vector<64x17xf32>
      tpu.vector_store %arg9[%c0_10, %c0_11], %13 {strides = array<i32>} : memref<64x17xf32, #tpu.memory_space<vmem>>, vector<64x17xf32>,
    } else {
    }
    %c0 = arith.constant 0 : index
    %c0_1 = arith.constant 0 : index
    %3 = vector.load %arg2[%c0, %c0_1] : memref<64x128xi8, #tpu.memory_space<vmem>>, vector<64x128xi8>
    %4 = arith.sitofp %3 : vector<64x128xi8> to vector<64x128xbf16>
    %c0_2 = arith.constant 0 : index
    %c0_3 = arith.constant 0 : index
    %5 = vector.load %arg9[%c0_2, %c0_3] : memref<64x17xf32, #tpu.memory_space<vmem>>, vector<64x17xf32>
    %c0_4 = arith.constant 0 : index
    %c0_5 = arith.constant 0 : index
    %6 = vector.load %arg3[%c0_4, %c0_5] : memref<128x17xbf16, #tpu.memory_space<vmem>>, vector<128x17xbf16>
    %cst = arith.constant dense<0.000000e+00> : vector<64x17xf32>
    %7 = tpu.matmul %4, %6, %cst {dimension_numbers = #tpu.dot_dimension_numbers<[1], [0], [0], [1], [0, 0, 1, 1], [], []>} : vector<64x128xbf16>, vector<128x17xbf16>, vector<64x17xf32> -> vector<64x17xf32>
    %8 = arith.addf %5, %7 : vector<64x17xf32>
    %c0_6 = arith.constant 0 : index
    %c0_7 = arith.constant 0 : index
    %9 = vector.load %arg9[%c0_6, %c0_7] : memref<64x17xf32, #tpu.memory_space<vmem>>, vector<64x17xf32>
    tpu.vector_store %arg9[%c0_6, %c0_7], %8 {strides = array<i32>} : memref<64x17xf32, #tpu.memory_space<vmem>>, vector<64x17xf32>,
    %c1_i32 = arith.constant 1 : i32
    %10 = arith.cmpi eq, %arg1, %c1_i32 : i32
    %11 = arith.extui %10 : i1 to i32
    %c0_i32_8 = arith.constant 0 : i32
    %12 = arith.cmpi ne, %11, %c0_i32_8 : i32
    scf.if %12 {
      %c0_9 = arith.constant 0 : index
      %c0_10 = arith.constant 0 : index
      %13 = vector.load %arg9[%c0_9, %c0_10] : memref<64x17xf32, #tpu.memory_space<vmem>>, vector<64x17xf32>
      %14 = vector.extract_strided_slice %13 {offsets = [0, 0], sizes = [64, 16], strides = [1, 1]} : vector<64x17xf32> to vector<64x16xf32>
      %15 = vector.extract_strided_slice %13 {offsets = [0, 16], sizes = [64, 1], strides = [1, 1]} : vector<64x17xf32> to vector<64x1xf32>
      %cst_11 = arith.constant 0.000000e+00 : f32
      %16 = vector.broadcast %cst_11 : f32 to vector<64x1xf32>
      %17 = arith.cmpf ogt, %15, %16 : vector<64x1xf32>
      %cst_12 = arith.constant 1.000000e+00 : f32
      %18 = vector.broadcast %cst_12 : f32 to vector<64x1xf32>
      %19 = arith.divf %18, %15 : vector<64x1xf32>
      %cst_13 = arith.constant 0.000000e+00 : f32
      %20 = vector.broadcast %cst_13 : f32 to vector<64x1xf32>
      %21 = arith.select %17, %19, %20 : vector<64x1xi1>, vector<64x1xf32>
      %22 = vector.broadcast %21 : vector<64x1xf32> to vector<64x16xf32>
      %23 = arith.mulf %14, %22 : vector<64x16xf32>
      %c0_14 = arith.constant 0 : index
      %c0_15 = arith.constant 0 : index
      %24 = vector.load %arg4[%c0_14, %c0_15] : memref<64x16xf32, #tpu.memory_space<vmem>>, vector<64x16xf32>
      %c0_16 = arith.constant 0 : index
      %c0_17 = arith.constant 0 : index
      %25 = vector.load %arg5[%c0_16, %c0_17] : memref<16x128xf32, #tpu.memory_space<vmem>>, vector<16x128xf32>
      %cst_18 = arith.constant dense<0.000000e+00> : vector<64x128xf32>
      %26 = tpu.matmul %24, %25, %cst_18 {dimension_numbers = #tpu.dot_dimension_numbers<[1], [0], [0], [1], [0, 0, 1, 1], [], []>} : vector<64x16xf32>, vector<16x128xf32>, vector<64x128xf32> -> vector<64x128xf32>
      %c0_19 = arith.constant 0 : index
      %c0_20 = arith.constant 0 : index
      %27 = vector.load %arg6[%c0_19, %c0_20] : memref<16x128xf32, #tpu.memory_space<vmem>>, vector<16x128xf32>
      %cst_21 = arith.constant dense<0.000000e+00> : vector<64x128xf32>
      %28 = tpu.matmul %23, %27, %cst_21 {dimension_numbers = #tpu.dot_dimension_numbers<[1], [0], [0], [1], [0, 0, 1, 1], [], []>} : vector<64x16xf32>, vector<16x128xf32>, vector<64x128xf32> -> vector<64x128xf32>
      %29 = arith.addf %26, %28 : vector<64x128xf32>
      %c0_22 = arith.constant 0 : index
      %c0_23 = arith.constant 0 : index
      %30 = vector.load %arg7[%c0_22, %c0_23] : memref<1x128xf32, #tpu.memory_space<vmem>>, vector<1x128xf32>
      %31 = vector.broadcast %30 : vector<1x128xf32> to vector<64x128xf32>
      %32 = arith.addf %29, %31 : vector<64x128xf32>
      %cst_24 = arith.constant 0.000000e+00 : f32
      %33 = vector.broadcast %cst_24 : f32 to vector<64x128xf32>
      %34 = arith.maximumf %32, %33 : vector<64x128xf32>
      %c0_25 = arith.constant 0 : index
      %c0_26 = arith.constant 0 : index
      %35 = vector.load %arg8[%c0_25, %c0_26] : memref<64x128xf32, #tpu.memory_space<vmem>>, vector<64x128xf32>
      tpu.vector_store %arg8[%c0_25, %c0_26], %34 {strides = array<i32>} : memref<64x128xf32, #tpu.memory_space<vmem>>, vector<64x128xf32>,
    } else {
    }
    return
  }
  func.func @transform_0(%arg0: i32, %arg1: i32) -> (i32, i32) {
    %c0_i32 = arith.constant 0 : i32
    return %arg0, %arg1 : i32, i32
  }
  func.func @transform_1(%arg0: i32, %arg1: i32) -> (i32, i32) {
    %c0_i32 = arith.constant 0 : i32
    %c0_i32_0 = arith.constant 0 : i32
    return %arg1, %c0_i32 : i32, i32
  }
  func.func @transform_2(%arg0: i32, %arg1: i32) -> (i32, i32) {
    %c0_i32 = arith.constant 0 : i32
    %c0_i32_0 = arith.constant 0 : i32
    return %arg0, %c0_i32 : i32, i32
  }
  func.func @transform_3(%arg0: i32, %arg1: i32) -> (i32, i32) {
    %c0_i32 = arith.constant 0 : i32
    %c0_i32_0 = arith.constant 0 : i32
    %c0_i32_1 = arith.constant 0 : i32
    return %c0_i32, %c0_i32_0 : i32, i32
  }
  func.func @transform_4(%arg0: i32, %arg1: i32) -> (i32, i32) {
    %c0_i32 = arith.constant 0 : i32
    %c0_i32_0 = arith.constant 0 : i32
    %c0_i32_1 = arith.constant 0 : i32
    return %c0_i32, %c0_i32_0 : i32, i32
  }
  func.func @transform_5(%arg0: i32, %arg1: i32) -> (i32, i32) {
    %c0_i32 = arith.constant 0 : i32
    %c0_i32_0 = arith.constant 0 : i32
    %c0_i32_1 = arith.constant 0 : i32
    return %c0_i32, %c0_i32_0 : i32, i32
  }
  func.func @transform_6(%arg0: i32, %arg1: i32) -> (i32, i32) {
    %c0_i32 = arith.constant 0 : i32
    %c0_i32_0 = arith.constant 0 : i32
    return %arg0, %c0_i32 : i32, i32
  }
}

</mosaic_0001>

<llo_original>
// kernel: tpu_custom_call.1
$region0: #{tpu_custom_call.1}
  #allocation0 [shape = 'u32[]', space=smem, size = 0x4, offset = 0x4, fixed_abs, tag = 'smem constant byte address 0x4 - core index']
  #allocation1 [shape = 'u32[144,128]{1,0:T(1,128)}', space=vmem, size = 0x12000, scoped, tag = 'internal scratch']
  #allocation2 [shape = 'f32[64,17]{1,0:T(8,128)}', space=vmem, size = 0x8000, scoped, tag = 'scratch operand']
  %s0 = inlined_call_operand.vmem [shape: s8[256,256], index: 0, kind: input, shape index: {}]
  %s1 = inlined_call_operand.vmem [shape: bf16[256,17], index: 1, kind: input, shape index: {}]
  %s2 = inlined_call_operand.vmem [shape: f32[256,16], index: 2, kind: input, shape index: {}]
  %s3 = inlined_call_operand.vmem [shape: f32[16,128], index: 3, kind: input, shape index: {}]
  %s4 = inlined_call_operand.vmem [shape: f32[16,128], index: 4, kind: input, shape index: {}]
  %s5 = inlined_call_operand.vmem [shape: f32[1,128], index: 5, kind: input, shape index: {}]
  %s6 = inlined_call_operand.hbm [shape: f32[256,128], index: 6, kind: output, shape index: {}]
  %s7 = sld [smem:[#allocation0]]
  $region103: #{tpu_custom_call.1} parent=0
    _
  %s9 = ssub.s32 1, %s7
  %s10 = scalar_select 0, %s9, %s7
  $region1: #{tpu_custom_call.1} parent=0
    #allocation3 [shape = 'u8[16384]{0}', space=vmem, size = 0x4000, scoped, tag = 'input window, operand 0']
    #allocation4 [shape = 'u8[65536]{0}', space=vmem, size = 0x10000, scoped, tag = 'output window, operand 0']
    #allocation5 [shape = 's32[2]{0}', space=sflag, size = 0x8, scoped, tag = 'scoped memory for tpu_custom_call.1']
    %11 = vsyncpa [#allocation5], 0
    %s12 = scalar_lea.sflag [#allocation5], 1
    %13 = vsyncpa %s12, 0
    loop: start=0, step=1, limit=10
    $region2: #{tpu_custom_call.1} parent=1 // loop_pre_header
      _
    $region3: #{tpu_custom_call.1} parent=1 // loop_header
      %s15 = sphi 0, %s19
      %p16 = scmp.ge.s32.totalorder %s15, 10
      %s22 = sphi 0, %s34
      %s23 = sphi 0, %s30
      %s24 = sphi 0, %s22
      %s25 = sphi 0, %s23
      %s26 = sphi 0, %s24
      %s27 = sphi 0, %s25
      %s39 = sphi 0, %s41
      %s42 = sphi 0, %s39
      %s43 = sphi 0, %s42
      %s59 = sphi 0, %s43
      %s65 = sphi 0, %s67
      %s68 = sphi 0, %s65
      %s69 = sphi 0, %s68
      %s85 = sphi 0, %s69
      %s91 = sphi 0, %s93
      %s94 = sphi 0, %s91
      %s95 = sphi 0, %s94
      %s111 = sphi 0, %s95
      %s115 = sphi 0, %s115
      %s117 = sphi 0, %s115
      %s118 = sphi 0, %s117
      %s132 = sphi 0, %s118
      %s136 = sphi 0, %s136
      %s138 = sphi 0, %s136
      %s139 = sphi 0, %s138
      %s153 = sphi 0, %s139
      %s157 = sphi 0, %s157
      %s159 = sphi 0, %s157
      %s160 = sphi 0, %s159
      %s174 = sphi 0, %s160
      %s180 = sphi 0, %s182
      %s183 = sphi 0, %s180
      %s184 = sphi 0, %s183
      %s200 = sphi 0, %s184
    $region4: #{tpu_custom_call.1} parent=1 // loop_header_branch
      %18 = sbr.rel (%p16) target = $region8
    $region5: #{tpu_custom_call.1} parent=1 // loop_body
      %s20 = ssub.s32 %s15, 1
      %s21 = ssub.s32 %s15, 2
      %s28 = sadd.s32 1, %s23
      %p29 = scmp.ge.s32.totalorder %s28, 2
      %s30 = scalar_select %p29, 0, %s28
      %s31 = sadd.s32 1, %s22
      %s32 = scalar_select %p29, %s31, %s22
      %p33 = scmp.ge.s32.totalorder %s32, 4
      %s34 = scalar_select %p33, 0, %s32
      %s35 = ssub.s32 %s22, %s34
      %s36 = ssub.s32 %s23, %s30
      %s37 = sor.u32 %s35, %s36
      %p38 = scmp.eq.s32.totalorder %s37, 0
      %s40 = sadd.s32 %s39, 1
      %s41 = scalar_select %p38, %s39, %s40
      %p44 = pneg %p38
      %p45 = scmp.eq.s32.totalorder %s15, 7
      %p46 = por %p44, %p45
      %p47 = scmp.ne.s32.totalorder %s39, %s42
      %p48 = scmp.eq.s32.totalorder %s15, 0
      %p49 = por %p47, %p48
      %p50 = scmp.ne.s32.totalorder %s39, %s42
      %p51 = scmp.eq.s32.totalorder %s20, 7
      %p52 = por %p50, %p51
      %p53 = scmp.ne.s32.totalorder %s42, %s43
      %p54 = scmp.eq.s32.totalorder %s20, 0
      %p55 = por %p53, %p54
      %p56 = scmp.ne.s32.totalorder %s42, %s43
      %p57 = scmp.eq.s32.totalorder %s21, 7
      %p58 = por %p56, %p57
      %p60 = scmp.ne.s32.totalorder %s43, %s59
      %p61 = scmp.eq.s32.totalorder %s21, 0
      %p62 = por %p60, %p61
      %s63 = ssub.s32 %s23, %s30
      %p64 = scmp.eq.s32.totalorder %s63, 0
      %s66 = sadd.s32 %s65, 1
      %s67 = scalar_select %p64, %s65, %s66
      %p70 = pneg %p64
      %p71 = scmp.eq.s32.totalorder %s15, 7
      %p72 = por %p70, %p71
      %p73 = scmp.ne.s32.totalorder %s65, %s68
      %p74 = scmp.eq.s32.totalorder %s15, 0
      %p75 = por %p73, %p74
      %p76 = scmp.ne.s32.totalorder %s65, %s68
      %p77 = scmp.eq.s32.totalorder %s20, 7
      %p78 = por %p76, %p77
      %p79 = scmp.ne.s32.totalorder %s68, %s69
      %p80 = scmp.eq.s32.totalorder %s20, 0
      %p81 = por %p79, %p80
      %p82 = scmp.ne.s32.totalorder %s68, %s69
      %p83 = scmp.eq.s32.totalorder %s21, 7
      %p84 = por %p82, %p83
      %p86 = scmp.ne.s32.totalorder %s69, %s85
      %p87 = scmp.eq.s32.totalorder %s21, 0
      %p88 = por %p86, %p87
      %s89 = ssub.s32 %s22, %s34
      %p90 = scmp.eq.s32.totalorder %s89, 0
      %s92 = sadd.s32 %s91, 1
      %s93 = scalar_select %p90, %s91, %s92
      %p96 = pneg %p90
      %p97 = scmp.eq.s32.totalorder %s15, 7
      %p98 = por %p96, %p97
      %p99 = scmp.ne.s32.totalorder %s91, %s94
      %p100 = scmp.eq.s32.totalorder %s15, 0
      %p101 = por %p99, %p100
      %p102 = scmp.ne.s32.totalorder %s91, %s94
      %p103 = scmp.eq.s32.totalorder %s20, 7
      %p104 = por %p102, %p103
      %p105 = scmp.ne.s32.totalorder %s94, %s95
      %p106 = scmp.eq.s32.totalorder %s20, 0
      %p107 = por %p105, %p106
      %p108 = scmp.ne.s32.totalorder %s94, %s95
      %p109 = scmp.eq.s32.totalorder %s21, 7
      %p110 = por %p108, %p109
      %p112 = scmp.ne.s32.totalorder %s95, %s111
      %p113 = scmp.eq.s32.totalorder %s21, 0
      %p114 = por %p112, %p113
      %s116 = sadd.s32 %s115, 1
      %p119 = scmp.eq.s32.totalorder %s15, 7
      %p120 = scmp.ne.s32.totalorder %s115, %s117
      %p121 = scmp.eq.s32.totalorder %s15, 0
      %p122 = por %p120, %p121
      %p123 = scmp.ne.s32.totalorder %s115, %s117
      %p124 = scmp.eq.s32.totalorder %s20, 7
      %p125 = por %p123, %p124
      %p126 = scmp.ne.s32.totalorder %s117, %s118
      %p127 = scmp.eq.s32.totalorder %s20, 0
      %p128 = por %p126, %p127
      %p129 = scmp.ne.s32.totalorder %s117, %s118
      %p130 = scmp.eq.s32.totalorder %s21, 7
      %p131 = por %p129, %p130
      %p133 = scmp.ne.s32.totalorder %s118, %s132
      %p134 = scmp.eq.s32.totalorder %s21, 0
      %p135 = por %p133, %p134
      %s137 = sadd.s32 %s136, 1
      %p140 = scmp.eq.s32.totalorder %s15, 7
      %p141 = scmp.ne.s32.totalorder %s136, %s138
      %p142 = scmp.eq.s32.totalorder %s15, 0
      %p143 = por %p141, %p142
      %p144 = scmp.ne.s32.totalorder %s136, %s138
      %p145 = scmp.eq.s32.totalorder %s20, 7
      %p146 = por %p144, %p145
      %p147 = scmp.ne.s32.totalorder %s138, %s139
      %p148 = scmp.eq.s32.totalorder %s20, 0
      %p149 = por %p147, %p148
      %p150 = scmp.ne.s32.totalorder %s138, %s139
      %p151 = scmp.eq.s32.totalorder %s21, 7
      %p152 = por %p150, %p151
      %p154 = scmp.ne.s32.totalorder %s139, %s153
      %p155 = scmp.eq.s32.totalorder %s21, 0
      %p156 = por %p154, %p155
      %s158 = sadd.s32 %s157, 1
      %p161 = scmp.eq.s32.totalorder %s15, 7
      %p162 = scmp.ne.s32.totalorder %s157, %s159
      %p163 = scmp.eq.s32.totalorder %s15, 0
      %p164 = por %p162, %p163
      %p165 = scmp.ne.s32.totalorder %s157, %s159
      %p166 = scmp.eq.s32.totalorder %s20, 7
      %p167 = por %p165, %p166
      %p168 = scmp.ne.s32.totalorder %s159, %s160
      %p169 = scmp.eq.s32.totalorder %s20, 0
      %p170 = por %p168, %p169
      %p171 = scmp.ne.s32.totalorder %s159, %s160
      %p172 = scmp.eq.s32.totalorder %s21, 7
      %p173 = por %p171, %p172
      %p175 = scmp.ne.s32.totalorder %s160, %s174
      %p176 = scmp.eq.s32.totalorder %s21, 0
      %p177 = por %p175, %p176
      %s178 = ssub.s32 %s22, %s34
      %p179 = scmp.eq.s32.totalorder %s178, 0
      %s181 = sadd.s32 %s180, 1
      %s182 = scalar_select %p179, %s180, %s181
      %p185 = pneg %p179
      %p186 = scmp.eq.s32.totalorder %s15, 7
      %p187 = por %p185, %p186
      %p188 = scmp.ne.s32.totalorder %s180, %s183
      %p189 = scmp.eq.s32.totalorder %s15, 0
      %p190 = por %p188, %p189
      %p191 = scmp.ne.s32.totalorder %s180, %s183
      %p192 = scmp.eq.s32.totalorder %s20, 7
      %p193 = por %p191, %p192
      %p194 = scmp.ne.s32.totalorder %s183, %s184
      %p195 = scmp.eq.s32.totalorder %s20, 0
      %p196 = por %p194, %p195
      %p197 = scmp.ne.s32.totalorder %s183, %s184
      %p198 = scmp.eq.s32.totalorder %s21, 7
      %p199 = por %p197, %p198
      %p201 = scmp.ne.s32.totalorder %s184, %s200
      %p202 = scmp.eq.s32.totalorder %s21, 0
      %p203 = por %p201, %p202
      %p204 = scmp.le.s32.totalorder 1, %s15
      %p205 = scmp.lt.s32.totalorder %s15, 9
      %p206 = pnand %p204, %p205
      %p207 = pneg %p206
      // Predicated region
      $region9: #{tpu_custom_call.1} parent=5 // pred_check
        _
      $region10: #{tpu_custom_call.1} parent=5 // pred_check_branch
        %209 = sbr.rel (%p206) target = $region12
      $region11: #{tpu_custom_call.1} parent=5 // pred_region
        %s210 = ssub.s32 %s15, 1
        // Predicated region
        $region13: #{tpu_custom_call.1} parent=11 // pred_check
          %p211 = pneg %p128
        $region14: #{tpu_custom_call.1} parent=11 // pred_check_branch
          %213 = sbr.rel (%p211) target = $region16
        $region15: #{tpu_custom_call.1} parent=11 // pred_region
          _
        $region16: #{tpu_custom_call.1} parent=11 // pred_fallthru
          _
        // Predicated region
        $region17: #{tpu_custom_call.1} parent=11 // pred_check
          %p214 = pneg %p149
        $region18: #{tpu_custom_call.1} parent=11 // pred_check_branch
          %216 = sbr.rel (%p214) target = $region20
        $region19: #{tpu_custom_call.1} parent=11 // pred_region
          _
        $region20: #{tpu_custom_call.1} parent=11 // pred_fallthru
          _
        // Predicated region
        $region21: #{tpu_custom_call.1} parent=11 // pred_check
          %p217 = pneg %p170
        $region22: #{tpu_custom_call.1} parent=11 // pred_check_branch
          %219 = sbr.rel (%p217) target = $region24
        $region23: #{tpu_custom_call.1} parent=11 // pred_region
          _
        $region24: #{tpu_custom_call.1} parent=11 // pred_fallthru
          _
      $region12: #{tpu_custom_call.1} parent=5 // pred_fallthru
        _
      %p220 = scmp.lt.s32.totalorder %s15, 8
      // Predicated region
      $region25: #{tpu_custom_call.1} parent=5 // pred_check
        %p221 = pneg %p220
      $region26: #{tpu_custom_call.1} parent=5 // pred_check_branch
        %223 = sbr.rel (%p221) target = $region28
      $region27: #{tpu_custom_call.1} parent=5 // pred_region
        // Predicated region
        $region29: #{tpu_custom_call.1} parent=27 // pred_check
          %p224 = pneg %p49
        $region30: #{tpu_custom_call.1} parent=27 // pred_check_branch
          %226 = sbr.rel (%p224) target = $region32
        $region31: #{tpu_custom_call.1} parent=27 // pred_region
          %s227 = sand.u32 %s39, 1
          %s228 = sand.u32 %s39, 1
          %s229 = smul.addr %s228, 16
          %s230 = scalar_lea.vmem [#allocation3], %s229
          %s231 = smul.u32 2, %s22
          %s232 = smul.addr %s231, 2
          %s233 = sadd.s32 %s23, %s232
          %s234 = smul.addr %s233, 8
          %s235 = scalar_lea.vmem %s0, %s234
          // Predicated region
          $region33: #{tpu_custom_call.1} parent=31 // pred_check
            _
          $region34: #{tpu_custom_call.1} parent=31 // pred_check_branch
            %237 = sbr.rel (0) target = $region36
          $region35: #{tpu_custom_call.1} parent=31 // pred_region
            // Predicated region
            $region37: #{tpu_custom_call.1} parent=35 // pred_check
              _
            $region38: #{tpu_custom_call.1} parent=35 // pred_check_branch
              %239 = sbr.rel (0) target = $region40
            $region39: #{tpu_custom_call.1} parent=35 // pred_region
              // Predicated region
              $region52: #{tpu_custom_call.1} parent=39 // pred_check
                _
              $region53: #{tpu_custom_call.1} parent=39 // pred_check_branch
                %256 = sbr.rel (0) target = $region55
              $region54: #{tpu_custom_call.1} parent=39 // pred_region
                loop: start=0, step=1, limit=1
                $region56: #{tpu_custom_call.1} parent=54 // loop_pre_header
                  _
                $region57: #{tpu_custom_call.1} parent=54 // loop_header
                  %s258 = sphi 0, %s262
                  %p259 = scmp.ge.s32.totalorder %s258, 1
                  %s263 = sphi %s235, %s235
                  %s264 = sphi %s230, %s230
                $region58: #{tpu_custom_call.1} parent=54 // loop_header_branch
                  %261 = sbr.rel (%p259) target = $region62
                $region59: #{tpu_custom_call.1} parent=54 // loop_body
                  %v265 = vld [vmem:[%s263] sm:$0xff]
                  %266 = vst [vmem:[%s264] sm:$0xff] %v265
                  %v267 = vld [vmem:[%s263 + $0x10] sm:$0xff]
                  %268 = vst [vmem:[%s264 + $0x8] sm:$0xff] %v267
                $region60: #{tpu_custom_call.1} parent=54 // loop_footer
                  %s262 = sadd.s32 1, %s258
                $region61: #{tpu_custom_call.1} parent=54 // loop_footer_branch
                  %257 = sbr.rel target = $region57
                $region62: #{tpu_custom_call.1} parent=54 // loop_exit
                  _
              $region55: #{tpu_custom_call.1} parent=39 // pred_fallthru
                _
              // Predicated region
              $region63: #{tpu_custom_call.1} parent=39 // pred_check
                _
              $region64: #{tpu_custom_call.1} parent=39 // pred_check_branch
                %270 = sbr.rel target = $region66
              $region65: #{tpu_custom_call.1} parent=39 // pred_region
                _
              $region66: #{tpu_custom_call.1} parent=39 // pred_fallthru
                _
            $region40: #{tpu_custom_call.1} parent=35 // pred_fallthru
              _
            // Predicated region
            $region41: #{tpu_custom_call.1} parent=35 // pred_check
              _
            $region42: #{tpu_custom_call.1} parent=35 // pred_check_branch
              %241 = sbr.rel target = $region44
            $region43: #{tpu_custom_call.1} parent=35 // pred_region
              loop: start=0, step=1, limit=1
              $region45: #{tpu_custom_call.1} parent=43 // loop_pre_header
                _
              $region46: #{tpu_custom_call.1} parent=43 // loop_header
                %s244 = sphi 0, %s248
                %p245 = scmp.ge.s32.totalorder %s244, 1
                %s249 = sphi %s235, %s235
                %s250 = sphi %s230, %s230
              $region47: #{tpu_custom_call.1} parent=43 // loop_header_branch
                %247 = sbr.rel (%p245) target = $region51
              $region48: #{tpu_custom_call.1} parent=43 // loop_body
                %v251 = vld [vmem:[%s249] sm:$0xff]
                %252 = vst [vmem:[%s250] sm:$0xff] %v251
                %v253 = vld [vmem:[%s249 + $0x10] sm:$0xff]
                %254 = vst [vmem:[%s250 + $0x8] sm:$0xff] %v253
              $region49: #{tpu_custom_call.1} parent=43 // loop_footer
                %s248 = sadd.s32 1, %s244
              $region50: #{tpu_custom_call.1} parent=43 // loop_footer_branch
                %243 = sbr.rel target = $region46
              $region51: #{tpu_custom_call.1} parent=43 // loop_exit
                _
            $region44: #{tpu_custom_call.1} parent=35 // pred_fallthru
              _
          $region36: #{tpu_custom_call.1} parent=31 // pred_fallthru
            _
          %271 = vnop
        $region32: #{tpu_custom_call.1} parent=27 // pred_fallthru
          _
        // Predicated region
        $region67: #{tpu_custom_call.1} parent=27 // pred_check
          %p272 = pneg %p75
        $region68: #{tpu_custom_call.1} parent=27 // pred_check_branch
          %274 = sbr.rel (%p272) target = $region70
        $region69: #{tpu_custom_call.1} parent=27 // pred_region
          %s275 = smul.u32 16, %s23
          %p276 = scmp.lt.s32.totalorder %s275, 31
          %s277 = scalar_select %p276, %s275, 31
          %s278 = smul.addr %s277, 4
          %s279 = scalar_lea.vmem %s1, %s278
          %s280 = smul.u32 16, %s23
        $region70: #{tpu_custom_call.1} parent=27 // pred_fallthru
          _
        // Predicated region
        $region71: #{tpu_custom_call.1} parent=27 // pred_check
          %p281 = pneg %p101
        $region72: #{tpu_custom_call.1} parent=27 // pred_check_branch
          %283 = sbr.rel (%p281) target = $region74
        $region73: #{tpu_custom_call.1} parent=27 // pred_region
          %s284 = smul.u32 8, %s22
          %p285 = scmp.lt.s32.totalorder %s284, 31
          %s286 = scalar_select %p285, %s284, 31
          %s287 = smul.addr %s286, 8
          %s288 = scalar_lea.vmem %s2, %s287
          %s289 = smul.u32 8, %s22
        $region74: #{tpu_custom_call.1} parent=27 // pred_fallthru
          _
      $region28: #{tpu_custom_call.1} parent=5 // pred_fallthru
        _
      %p290 = scmp.le.s32.totalorder 1, %s15
      %p291 = scmp.lt.s32.totalorder %s15, 9
      %p292 = pnand %p290, %p291
      %p293 = pneg %p292
      // Predicated region
      $region75: #{tpu_custom_call.1} parent=5 // pred_check
        _
      $region76: #{tpu_custom_call.1} parent=5 // pred_check_branch
        %295 = sbr.rel (%p292) target = $region78
      $region77: #{tpu_custom_call.1} parent=5 // pred_region
        %s296 = ssub.s32 %s15, 1
        %s297 = sand.u32 %s42, 1
        %s298 = sand.u32 %s42, 1
        %s299 = smul.addr %s298, 16
        %s300 = scalar_lea.vmem [#allocation3], %s299
        // Predicated region
        $region79: #{tpu_custom_call.1} parent=77 // pred_check
          %p301 = pneg %p55
        $region80: #{tpu_custom_call.1} parent=77 // pred_check_branch
          %303 = sbr.rel (%p301) target = $region82
        $region81: #{tpu_custom_call.1} parent=77 // pred_region
          _
        $region82: #{tpu_custom_call.1} parent=77 // pred_fallthru
          _
        %s304 = sand.u32 %s42, 1
        %s305 = sand.u32 %s42, 1
        %s306 = smul.addr %s305, 16
        %s307 = scalar_lea.vmem [#allocation3], %s306
        %p308 = pneg %p55
        %p309 = pneg %p52
        %s310 = smul.u32 16, %s25
        %p311 = scmp.lt.s32.totalorder %s310, 31
        %s312 = scalar_select %p311, %s310, 31
        %s313 = smul.addr %s312, 4
        %s314 = scalar_lea.vmem %s1, %s313
        %p315 = pneg %p81
        %p316 = pneg %p78
        %s317 = smul.u32 8, %s24
        %p318 = scmp.lt.s32.totalorder %s317, 31
        %s319 = scalar_select %p318, %s317, 31
        %s320 = smul.addr %s319, 8
        %s321 = scalar_lea.vmem %s2, %s320
        %p322 = pneg %p107
        %p323 = pneg %p104
        %p324 = pneg %p128
        %p325 = pneg %p125
        %p326 = pneg %p149
        %p327 = pneg %p146
        %p328 = pneg %p170
        %p329 = pneg %p167
        %p330 = pneg %p196
        %p331 = pneg %p193
        %s332 = sand.u32 %s183, 1
        %s333 = scalar_lea.sflag [#allocation5], %s332
        %s334 = sand.u32 %s183, 1
        %s335 = smul.addr %s334, 64
        %s336 = scalar_lea.vmem [#allocation4], %s335
        %s337 = smul.u32 2, %s24
        %s338 = smul.u32 16, %s25
        %p339 = scmp.lt.s32.totalorder %s338, 31
        %s340 = scalar_select %p339, %s338, 31
        %s341 = smul.addr %s340, 4
        %s342 = scalar_lea.vmem %s1, %s341
        %s343 = smul.u32 16, %s25
        %s344 = smul.u32 8, %s24
        %p345 = scmp.lt.s32.totalorder %s344, 31
        %s346 = scalar_select %p345, %s344, 31
        %s347 = smul.addr %s346, 8
        %s348 = scalar_lea.vmem %s2, %s347
        %s349 = smul.u32 8, %s24
        %s350 = smul.u32 8, %s24
        %p352 = scmp.eq.s32.totalorder %s25, 0
        // Predicated region
        $region83: #{tpu_custom_call.1} parent=77 // pred_check
          %p353 = pneg %p352
        $region84: #{tpu_custom_call.1} parent=77 // pred_check_branch
          %355 = sbr.rel (%p353) target = $region86
        $region85: #{tpu_custom_call.1} parent=77 // pred_region
          %vm356 = vcmask 138240
          %357 = vst.msk [vmem:[#allocation2] sm:$0xff] %vm356, 0.0
          %358 = vst.msk [vmem:[#allocation2 + $0x8] sm:$0xff] %vm356, 0.0
          %359 = vst.msk [vmem:[#allocation2 + $0x10] sm:$0xff] %vm356, 0.0
          %360 = vst.msk [vmem:[#allocation2 + $0x18] sm:$0xff] %vm356, 0.0
          %361 = vst.msk [vmem:[#allocation2 + $0x20] sm:$0xff] %vm356, 0.0
          %362 = vst.msk [vmem:[#allocation2 + $0x28] sm:$0xff] %vm356, 0.0
          %363 = vst.msk [vmem:[#allocation2 + $0x30] sm:$0xff] %vm356, 0.0
          %364 = vst.msk [vmem:[#allocation2 + $0x38] sm:$0xff] %vm356, 0.0
        $region86: #{tpu_custom_call.1} parent=77 // pred_fallthru
          _
        %v365 = vld [vmem:[%s300] sm:$0xff]
        %v366 = vld [vmem:[%s300 + $0x8] sm:$0xff]
        %v367 = vunpack.c.l.s8.bf16 %v365
        %v368 = vunpack.c.h.s8.bf16 %v365
        %v369 = vunpack.c.l.s8.bf16 %v366
        %v370 = vunpack.c.h.s8.bf16 %v366
        %v371 = vld [vmem:[#allocation2] sm:$0xff]
        %v372 = vld [vmem:[#allocation2 + $0x8] sm:$0xff]
        %v373 = vld [vmem:[#allocation2 + $0x10] sm:$0xff]
        %v374 = vld [vmem:[#allocation2 + $0x18] sm:$0xff]
        %v375 = vld [vmem:[#allocation2 + $0x20] sm:$0xff]
        %v376 = vld [vmem:[#allocation2 + $0x28] sm:$0xff]
        %v377 = vld [vmem:[#allocation2 + $0x30] sm:$0xff]
        %v378 = vld [vmem:[#allocation2 + $0x38] sm:$0xff]
        %v379 = vld [vmem:[%s342] sm:$0xf]
        %v380 = vld [vmem:[%s342 + $0x4] sm:$0xf]
        %v381 = vld [vmem:[%s342 + $0x8] sm:$0xf]
        %v382 = vld [vmem:[%s342 + $0xc] sm:$0xf]
        %v383 = vld [vmem:[%s342 + $0x10] sm:$0xf]
        %v384 = vld [vmem:[%s342 + $0x14] sm:$0xf]
        %v385 = vld [vmem:[%s342 + $0x18] sm:$0xf]
        %v386 = vld [vmem:[%s342 + $0x1c] sm:$0xf]
        %v387 = vld [vmem:[%s342 + $0x20] sm:$0xf]
        %v388 = vld [vmem:[%s342 + $0x24] sm:$0xf]
        %v389 = vld [vmem:[%s342 + $0x28] sm:$0xf]
        %v390 = vld [vmem:[%s342 + $0x2c] sm:$0xf]
        %v391 = vld [vmem:[%s342 + $0x30] sm:$0xf]
        %v392 = vld [vmem:[%s342 + $0x34] sm:$0xf]
        %v393 = vld [vmem:[%s342 + $0x38] sm:$0xf]
        %v394 = vld [vmem:[%s342 + $0x3c] sm:$0xf]
        %v411 = vunpack.c.l.b16 %v379
        %v412 = vunpack.c.l.b16 %v380
        %v413 = vunpack.c.l.b16 %v381
        %v414 = vunpack.c.l.b16 %v382
        %v415 = vunpack.c.l.b16 %v383
        %v416 = vunpack.c.l.b16 %v384
        %v417 = vunpack.c.l.b16 %v385
        %v418 = vunpack.c.l.b16 %v386
        %v419 = vunpack.c.l.b16 %v387
        %v420 = vunpack.c.l.b16 %v388
        %v421 = vunpack.c.l.b16 %v389
        %v422 = vunpack.c.l.b16 %v390
        %v423 = vunpack.c.l.b16 %v391
        %v424 = vunpack.c.l.b16 %v392
        %v425 = vunpack.c.l.b16 %v393
        %v426 = vunpack.c.l.b16 %v394
        %v427 = vpack.c.b16 %v412, %v411
        %v428 = vpack.c.b16 %v414, %v413
        %v429 = vpack.c.b16 %v416, %v415
        %v430 = vpack.c.b16 %v418, %v417
        %v431 = vpack.c.b16 %v420, %v419
        %v432 = vpack.c.b16 %v422, %v421
        %v433 = vpack.c.b16 %v424, %v423
        %v434 = vpack.c.b16 %v426, %v425
        %443 = vmatprep.subr.bf16.mxu0 0
        %444 = vmatpush1.bf16.msra.mxu0 %v427
        %445 = vmatprep.subr.bf16.mxu0 0
        %446 = vmatpush1.bf16.msra.mxu0 %v428
        %447 = vmatprep.subr.bf16.mxu0 0
        %448 = vmatpush1.bf16.msra.mxu0 %v429
        %449 = vmatprep.subr.bf16.mxu0 0
        %450 = vmatpush1.bf16.msra.mxu0 %v430
        %451 = vmatprep.subr.bf16.mxu0 0
        %452 = vmatpush1.bf16.msra.mxu0 %v431
        %453 = vmatprep.subr.bf16.mxu0 0
        %454 = vmatpush1.bf16.msra.mxu0 %v432
        %455 = vmatprep.subr.bf16.mxu0 0
        %456 = vmatpush1.bf16.msra.mxu0 %v433
        %457 = vmatprep.subr.bf16.mxu0 0
        %458 = vmatpush1.bf16.msra.mxu0 %v434
        %459 = vmatprep.subr.bf16.mxu0 0
        %460 = vmatpush1.bf16.msra.mxu0 0
        %461 = vmatprep.subr.bf16.mxu0 0
        %462 = vmatpush1.bf16.msra.mxu0 0
        %463 = vmatprep.subr.bf16.mxu0 0
        %464 = vmatpush1.bf16.msra.mxu0 0
        %465 = vmatprep.subr.bf16.mxu0 0
        %466 = vmatpush1.bf16.msra.mxu0 0
        %467 = vmatprep.subr.bf16.mxu0 0
        %468 = vmatpush1.bf16.msra.mxu0 0
        %469 = vmatprep.subr.bf16.mxu0 0
        %470 = vmatpush1.bf16.msra.mxu0 0
        %471 = vmatprep.subr.bf16.mxu0 0
        %472 = vmatpush1.bf16.msra.mxu0 0
        %473 = vmatprep.subr.bf16.mxu0 0
        %474 = vmatpush1.bf16.msra.mxu0 0
        %475 = vmatprep.mubr.bf16.mxu0 0
        %476 = vmatmul.mubr.bf16.gmra.mrb[0].mxu0 %v367
        %v477 = vpop.f32.mrb[0].mxu0
        %v478 = vadd.f32 0.0, %v477
        %v479 = vpop.f32.mrb[0].mxu0
        %v480 = vpop.f32.mrb[0].mxu0
        %v481 = vadd.f32 0.0, %v480
        %v482 = vpop.f32.mrb[0].mxu0
        %483 = vmatprep.mubr.bf16.mxu0 0
        %484 = vmatmul.mubr.bf16.gmra.mrb[0].mxu0 %v368
        %v485 = vpop.f32.mrb[0].mxu0
        %v486 = vadd.f32 0.0, %v485
        %v487 = vpop.f32.mrb[0].mxu0
        %v488 = vpop.f32.mrb[0].mxu0
        %v489 = vadd.f32 0.0, %v488
        %v490 = vpop.f32.mrb[0].mxu0
        %491 = vmatprep.mubr.bf16.mxu0 0
        %492 = vmatmul.mubr.bf16.gmra.mrb[0].mxu0 %v369
        %v493 = vpop.f32.mrb[0].mxu0
        %v494 = vadd.f32 0.0, %v493
        %v495 = vpop.f32.mrb[0].mxu0
        %v496 = vpop.f32.mrb[0].mxu0
        %v497 = vadd.f32 0.0, %v496
        %v498 = vpop.f32.mrb[0].mxu0
        %499 = vmatprep.mubr.bf16.mxu0 0
        %500 = vmatmul.mubr.bf16.gmra.mrb[0].mxu0 %v370
        %v501 = vpop.f32.mrb[0].mxu0
        %v502 = vadd.f32 0.0, %v501
        %v503 = vpop.f32.mrb[0].mxu0
        %v504 = vpop.f32.mrb[0].mxu0
        %v505 = vadd.f32 0.0, %v504
        %v506 = vpop.f32.mrb[0].mxu0
        %507 = vdwg.mxu0
        %v508 = vadd.f32 %v371, %v478
        %v509 = vadd.f32 %v372, %v481
        %v510 = vadd.f32 %v373, %v486
        %v511 = vadd.f32 %v374, %v489
        %v512 = vadd.f32 %v375, %v494
        %v513 = vadd.f32 %v376, %v497
        %v514 = vadd.f32 %v377, %v502
        %v515 = vadd.f32 %v378, %v505
        %vm516 = vcmask 138240
        %517 = vst.msk [vmem:[#allocation2] sm:$0xff] %vm516, %v508
        %518 = vst.msk [vmem:[#allocation2 + $0x8] sm:$0xff] %vm516, %v509
        %519 = vst.msk [vmem:[#allocation2 + $0x10] sm:$0xff] %vm516, %v510
        %520 = vst.msk [vmem:[#allocation2 + $0x18] sm:$0xff] %vm516, %v511
        %521 = vst.msk [vmem:[#allocation2 + $0x20] sm:$0xff] %vm516, %v512
        %522 = vst.msk [vmem:[#allocation2 + $0x28] sm:$0xff] %vm516, %v513
        %523 = vst.msk [vmem:[#allocation2 + $0x30] sm:$0xff] %vm516, %v514
        %524 = vst.msk [vmem:[#allocation2 + $0x38] sm:$0xff] %vm516, %v515
        %p525 = scmp.eq.s32.totalorder %s25, 1
        // Predicated region
        $region87: #{tpu_custom_call.1} parent=77 // pred_check
          %p526 = pneg %p525
        $region88: #{tpu_custom_call.1} parent=77 // pred_check_branch
          %528 = sbr.rel (%p526) target = $region90
        $region89: #{tpu_custom_call.1} parent=77 // pred_region
          %v529 = vld [vmem:[#allocation2] sm:$0xff]
          %v530 = vld [vmem:[#allocation2 + $0x8] sm:$0xff]
          %v531 = vld [vmem:[#allocation2 + $0x10] sm:$0xff]
          %v532 = vld [vmem:[#allocation2 + $0x18] sm:$0xff]
          %v533 = vld [vmem:[#allocation2 + $0x20] sm:$0xff]
          %v534 = vld [vmem:[#allocation2 + $0x28] sm:$0xff]
          %v535 = vld [vmem:[#allocation2 + $0x30] sm:$0xff]
          %v536 = vld [vmem:[#allocation2 + $0x38] sm:$0xff]
          %vm537 = vcmp.gt.f32.partialorder %v529, 0.0
          %vm538 = vcmp.gt.f32.partialorder %v530, 0.0
          %vm539 = vcmp.gt.f32.partialorder %v531, 0.0
          %vm540 = vcmp.gt.f32.partialorder %v532, 0.0
          %vm541 = vcmp.gt.f32.partialorder %v533, 0.0
          %vm542 = vcmp.gt.f32.partialorder %v534, 0.0
          %vm543 = vcmp.gt.f32.partialorder %v535, 0.0
          %vm544 = vcmp.gt.f32.partialorder %v536, 0.0
          %v545 = vrcp.pop %v529
          %v546 = vmul.f32 1.0, %v545
          %v547 = vrcp.pop %v530
          %v548 = vmul.f32 1.0, %v547
          %v549 = vrcp.pop %v531
          %v550 = vmul.f32 1.0, %v549
          %v551 = vrcp.pop %v532
          %v552 = vmul.f32 1.0, %v551
          %v553 = vrcp.pop %v533
          %v554 = vmul.f32 1.0, %v553
          %v555 = vrcp.pop %v534
          %v556 = vmul.f32 1.0, %v555
          %v557 = vrcp.pop %v535
          %v558 = vmul.f32 1.0, %v557
          %v559 = vrcp.pop %v536
          %v560 = vmul.f32 1.0, %v559
          %v561 = vsel %vm537, %v546, 0.0
          %v562 = vsel %vm538, %v548, 0.0
          %v563 = vsel %vm539, %v550, 0.0
          %v564 = vsel %vm540, %v552, 0.0
          %v565 = vsel %vm541, %v554, 0.0
          %v566 = vsel %vm542, %v556, 0.0
          %v567 = vsel %vm543, %v558, 0.0
          %v568 = vsel %vm544, %v560, 0.0
          %570 = vset.pattern.permute.xlu0 16
          %571 = vperm.xlu0 %570, %v561
          %v572 = vpop.permute.xlu0 %571
          %575 = vset.pattern.permute.xlu0 16
          %576 = vperm.xlu0 %575, %v562
          %v577 = vpop.permute.xlu0 %576
          %580 = vset.pattern.permute.xlu0 16
          %581 = vperm.xlu0 %580, %v563
          %v582 = vpop.permute.xlu0 %581
          %585 = vset.pattern.permute.xlu0 16
          %586 = vperm.xlu0 %585, %v564
          %v587 = vpop.permute.xlu0 %586
          %590 = vset.pattern.permute.xlu0 16
          %591 = vperm.xlu0 %590, %v565
          %v592 = vpop.permute.xlu0 %591
          %595 = vset.pattern.permute.xlu0 16
          %596 = vperm.xlu0 %595, %v566
          %v597 = vpop.permute.xlu0 %596
          %600 = vset.pattern.permute.xlu0 16
          %601 = vperm.xlu0 %600, %v567
          %v602 = vpop.permute.xlu0 %601
          %605 = vset.pattern.permute.xlu0 16
          %606 = vperm.xlu0 %605, %v568
          %v607 = vpop.permute.xlu0 %606
          %v609 = vmul.f32 %v529, %v572
          %v610 = vmul.f32 %v530, %v577
          %v611 = vmul.f32 %v531, %v582
          %v612 = vmul.f32 %v532, %v587
          %v613 = vmul.f32 %v533, %v592
          %v614 = vmul.f32 %v534, %v597
          %v615 = vmul.f32 %v535, %v602
          %v616 = vmul.f32 %v536, %v607
          %v617 = vld [vmem:[%s348] sm:$0xff]
          %v618 = vld [vmem:[%s348 + $0x8] sm:$0xff]
          %v619 = vld [vmem:[%s348 + $0x10] sm:$0xff]
          %v620 = vld [vmem:[%s348 + $0x18] sm:$0xff]
          %v621 = vld [vmem:[%s348 + $0x20] sm:$0xff]
          %v622 = vld [vmem:[%s348 + $0x28] sm:$0xff]
          %v623 = vld [vmem:[%s348 + $0x30] sm:$0xff]
          %v624 = vld [vmem:[%s348 + $0x38] sm:$0xff]
          %v625 = vld [vmem:[%s3] sm:$0xff]
          %v626 = vld [vmem:[%s3 + $0x8] sm:$0xff]
          %v627 = vld [vmem:[%s4] sm:$0xff]
          %v628 = vld [vmem:[%s4 + $0x8] sm:$0xff]
          %vm629 = vcmask 130048
          %v631 = vsel %vm629, %v609, 0
          %v634 = vsel %vm629, %v610, 0
          %v637 = vsel %vm629, %v611, 0
          %v640 = vsel %vm629, %v612, 0
          %v643 = vsel %vm629, %v613, 0
          %v646 = vsel %vm629, %v614, 0
          %v649 = vsel %vm629, %v615, 0
          %v652 = vsel %vm629, %v616, 0
          %654 = vmatprep.subr.mxu0 0.0
          %655 = vmatpush1.msra.mxu0 %v627
          %656 = vmatprep.subr.mxu0 0.0
          %657 = vmatpush1.msra.mxu0 %v628
          %658 = vmatprep.subr.mxu0 0.0
          %659 = vmatpush1.msra.mxu0 0.0
          %660 = vmatprep.subr.mxu0 0.0
          %661 = vmatpush1.msra.mxu0 0.0
          %662 = vmatprep.subr.mxu0 0.0
          %663 = vmatpush1.msra.mxu0 0.0
          %664 = vmatprep.subr.mxu0 0.0
          %665 = vmatpush1.msra.mxu0 0.0
          %666 = vmatprep.subr.mxu0 0.0
          %667 = vmatpush1.msra.mxu0 0.0
          %668 = vmatprep.subr.mxu0 0.0
          %669 = vmatpush1.msra.mxu0 0.0
          %670 = vmatprep.subr.mxu0 0.0
          %671 = vmatpush1.msra.mxu0 0.0
          %672 = vmatprep.subr.mxu0 0.0
          %673 = vmatpush1.msra.mxu0 0.0
          %674 = vmatprep.subr.mxu0 0.0
          %675 = vmatpush1.msra.mxu0 0.0
          %676 = vmatprep.subr.mxu0 0.0
          %677 = vmatpush1.msra.mxu0 0.0
          %678 = vmatprep.subr.mxu0 0.0
          %679 = vmatpush1.msra.mxu0 0.0
          %680 = vmatprep.subr.mxu0 0.0
          %681 = vmatpush1.msra.mxu0 0.0
          %682 = vmatprep.subr.mxu0 0.0
          %683 = vmatpush1.msra.mxu0 0.0
          %684 = vmatprep.subr.mxu0 0.0
          %685 = vmatpush1.msra.mxu0 0.0
          %686 = vmatprep.subr.mxu0 0.0
          %687 = vmatpush1.msra.mxu0 0.0
          %688 = vmatprep.subr.mxu0 0.0
          %689 = vmatpush1.msra.mxu0 0.0
          %690 = vmatprep.subr.mxu0 0.0
          %691 = vmatpush1.msra.mxu0 0.0
          %692 = vmatprep.subr.mxu0 0.0
          %693 = vmatpush1.msra.mxu0 0.0
          %694 = vmatprep.subr.mxu0 0.0
          %695 = vmatpush1.msra.mxu0 0.0
          %696 = vmatprep.subr.mxu0 0.0
          %697 = vmatpush1.msra.mxu0 0.0
          %698 = vmatprep.subr.mxu0 0.0
          %699 = vmatpush1.msra.mxu0 0.0
          %700 = vmatprep.subr.mxu0 0.0
          %701 = vmatpush1.msra.mxu0 0.0
          %702 = vmatprep.subr.mxu0 0.0
          %703 = vmatpush1.msra.mxu0 0.0
          %704 = vmatprep.subr.mxu0 0.0
          %705 = vmatpush1.msra.mxu0 0.0
          %706 = vmatprep.subr.mxu0 0.0
          %707 = vmatpush1.msra.mxu0 0.0
          %708 = vmatprep.subr.mxu0 0.0
          %709 = vmatpush1.msra.mxu0 0.0
          %710 = vmatprep.subr.mxu0 0.0
          %711 = vmatpush1.msra.mxu0 0.0
          %712 = vmatprep.subr.mxu0 0.0
          %713 = vmatpush1.msra.mxu0 0.0
          %714 = vmatprep.subr.mxu0 0.0
          %715 = vmatpush1.msra.mxu0 0.0
          %716 = vmatprep.subr.mxu0 0.0
          %717 = vmatpush1.msra.mxu0 0.0
          %718 = vmatprep.mubr.f32.mxu0 0.0
          %719 = vmatmul.mubr.f32.gmra.mrb[0].mxu0 %v631
          %v720 = vpop.f32.mrb[0].mxu0
          %v721 = vadd.f32 0.0, %v720
          %v722 = vpop.f32.mrb[0].mxu0
          %723 = vmatprep.mubr.f32.mxu0 0.0
          %724 = vmatmul.mubr.f32.gmra.mrb[0].mxu0 %v634
          %v725 = vpop.f32.mrb[0].mxu0
          %v726 = vadd.f32 0.0, %v725
          %v727 = vpop.f32.mrb[0].mxu0
          %728 = vmatprep.mubr.f32.mxu0 0.0
          %729 = vmatmul.mubr.f32.gmra.mrb[0].mxu0 %v637
          %v730 = vpop.f32.mrb[0].mxu0
          %v731 = vadd.f32 0.0, %v730
          %v732 = vpop.f32.mrb[0].mxu0
          %733 = vmatprep.mubr.f32.mxu0 0.0
          %734 = vmatmul.mubr.f32.gmra.mrb[0].mxu0 %v640
          %v735 = vpop.f32.mrb[0].mxu0
          %v736 = vadd.f32 0.0, %v735
          %v737 = vpop.f32.mrb[0].mxu0
          %738 = vmatprep.mubr.f32.mxu0 0.0
          %739 = vmatmul.mubr.f32.gmra.mrb[0].mxu0 %v643
          %v740 = vpop.f32.mrb[0].mxu0
          %v741 = vadd.f32 0.0, %v740
          %v742 = vpop.f32.mrb[0].mxu0
          %743 = vmatprep.mubr.f32.mxu0 0.0
          %744 = vmatmul.mubr.f32.gmra.mrb[0].mxu0 %v646
          %v745 = vpop.f32.mrb[0].mxu0
          %v746 = vadd.f32 0.0, %v745
          %v747 = vpop.f32.mrb[0].mxu0
          %748 = vmatprep.mubr.f32.mxu0 0.0
          %749 = vmatmul.mubr.f32.gmra.mrb[0].mxu0 %v649
          %v750 = vpop.f32.mrb[0].mxu0
          %v751 = vadd.f32 0.0, %v750
          %v752 = vpop.f32.mrb[0].mxu0
          %753 = vmatprep.mubr.f32.mxu0 0.0
          %754 = vmatmul.mubr.f32.gmra.mrb[0].mxu0 %v652
          %v755 = vpop.f32.mrb[0].mxu0
          %v756 = vadd.f32 0.0, %v755
          %v757 = vpop.f32.mrb[0].mxu0
          %758 = vdwg.mxu0
          %v760 = vsel %vm629, %v617, 0
          %v763 = vsel %vm629, %v618, 0
          %v766 = vsel %vm629, %v619, 0
          %v769 = vsel %vm629, %v620, 0
          %v772 = vsel %vm629, %v621, 0
          %v775 = vsel %vm629, %v622, 0
          %v778 = vsel %vm629, %v623, 0
          %v781 = vsel %vm629, %v624, 0
          %783 = vmatprep.subr.mxu0 0.0
          %784 = vmatpush1.msra.mxu0 %v625
          %785 = vmatprep.subr.mxu0 0.0
          %786 = vmatpush1.msra.mxu0 %v626
          %787 = vmatprep.subr.mxu0 0.0
          %788 = vmatpush1.msra.mxu0 0.0
          %789 = vmatprep.subr.mxu0 0.0
          %790 = vmatpush1.msra.mxu0 0.0
          %791 = vmatprep.subr.mxu0 0.0
          %792 = vmatpush1.msra.mxu0 0.0
          %793 = vmatprep.subr.mxu0 0.0
          %794 = vmatpush1.msra.mxu0 0.0
          %795 = vmatprep.subr.mxu0 0.0
          %796 = vmatpush1.msra.mxu0 0.0
          %797 = vmatprep.subr.mxu0 0.0
          %798 = vmatpush1.msra.mxu0 0.0
          %799 = vmatprep.subr.mxu0 0.0
          %800 = vmatpush1.msra.mxu0 0.0
          %801 = vmatprep.subr.mxu0 0.0
          %802 = vmatpush1.msra.mxu0 0.0
          %803 = vmatprep.subr.mxu0 0.0
          %804 = vmatpush1.msra.mxu0 0.0
          %805 = vmatprep.subr.mxu0 0.0
          %806 = vmatpush1.msra.mxu0 0.0
          %807 = vmatprep.subr.mxu0 0.0
          %808 = vmatpush1.msra.mxu0 0.0
          %809 = vmatprep.subr.mxu0 0.0
          %810 = vmatpush1.msra.mxu0 0.0
          %811 = vmatprep.subr.mxu0 0.0
          %812 = vmatpush1.msra.mxu0 0.0
          %813 = vmatprep.subr.mxu0 0.0
          %814 = vmatpush1.msra.mxu0 0.0
          %815 = vmatprep.subr.mxu0 0.0
          %816 = vmatpush1.msra.mxu0 0.0
          %817 = vmatprep.subr.mxu0 0.0
          %818 = vmatpush1.msra.mxu0 0.0
          %819 = vmatprep.subr.mxu0 0.0
          %820 = vmatpush1.msra.mxu0 0.0
          %821 = vmatprep.subr.mxu0 0.0
          %822 = vmatpush1.msra.mxu0 0.0
          %823 = vmatprep.subr.mxu0 0.0
          %824 = vmatpush1.msra.mxu0 0.0
          %825 = vmatprep.subr.mxu0 0.0
          %826 = vmatpush1.msra.mxu0 0.0
          %827 = vmatprep.subr.mxu0 0.0
          %828 = vmatpush1.msra.mxu0 0.0
          %829 = vmatprep.subr.mxu0 0.0
          %830 = vmatpush1.msra.mxu0 0.0
          %831 = vmatprep.subr.mxu0 0.0
          %832 = vmatpush1.msra.mxu0 0.0
          %833 = vmatprep.subr.mxu0 0.0
          %834 = vmatpush1.msra.mxu0 0.0
          %835 = vmatprep.subr.mxu0 0.0
          %836 = vmatpush1.msra.mxu0 0.0
          %837 = vmatprep.subr.mxu0 0.0
          %838 = vmatpush1.msra.mxu0 0.0
          %839 = vmatprep.subr.mxu0 0.0
          %840 = vmatpush1.msra.mxu0 0.0
          %841 = vmatprep.subr.mxu0 0.0
          %842 = vmatpush1.msra.mxu0 0.0
          %843 = vmatprep.subr.mxu0 0.0
          %844 = vmatpush1.msra.mxu0 0.0
          %845 = vmatprep.subr.mxu0 0.0
          %846 = vmatpush1.msra.mxu0 0.0
          %847 = vmatprep.mubr.f32.mxu0 0.0
          %848 = vmatmul.mubr.f32.gmra.mrb[0].mxu0 %v760
          %v849 = vpop.f32.mrb[0].mxu0
          %v850 = vadd.f32 %v721, %v849
          %v851 = vpop.f32.mrb[0].mxu0
          %852 = vmatprep.mubr.f32.mxu0 0.0
          %853 = vmatmul.mubr.f32.gmra.mrb[0].mxu0 %v763
          %v854 = vpop.f32.mrb[0].mxu0
          %v855 = vadd.f32 %v726, %v854
          %v856 = vpop.f32.mrb[0].mxu0
          %857 = vmatprep.mubr.f32.mxu0 0.0
          %858 = vmatmul.mubr.f32.gmra.mrb[0].mxu0 %v766
          %v859 = vpop.f32.mrb[0].mxu0
          %v860 = vadd.f32 %v731, %v859
          %v861 = vpop.f32.mrb[0].mxu0
          %862 = vmatprep.mubr.f32.mxu0 0.0
          %863 = vmatmul.mubr.f32.gmra.mrb[0].mxu0 %v769
          %v864 = vpop.f32.mrb[0].mxu0
          %v865 = vadd.f32 %v736, %v864
          %v866 = vpop.f32.mrb[0].mxu0
          %867 = vmatprep.mubr.f32.mxu0 0.0
          %868 = vmatmul.mubr.f32.gmra.mrb[0].mxu0 %v772
          %v869 = vpop.f32.mrb[0].mxu0
          %v870 = vadd.f32 %v741, %v869
          %v871 = vpop.f32.mrb[0].mxu0
          %872 = vmatprep.mubr.f32.mxu0 0.0
          %873 = vmatmul.mubr.f32.gmra.mrb[0].mxu0 %v775
          %v874 = vpop.f32.mrb[0].mxu0
          %v875 = vadd.f32 %v746, %v874
          %v876 = vpop.f32.mrb[0].mxu0
          %877 = vmatprep.mubr.f32.mxu0 0.0
          %878 = vmatmul.mubr.f32.gmra.mrb[0].mxu0 %v778
          %v879 = vpop.f32.mrb[0].mxu0
          %v880 = vadd.f32 %v751, %v879
          %v881 = vpop.f32.mrb[0].mxu0
          %882 = vmatprep.mubr.f32.mxu0 0.0
          %883 = vmatmul.mubr.f32.gmra.mrb[0].mxu0 %v781
          %v884 = vpop.f32.mrb[0].mxu0
          %v885 = vadd.f32 %v756, %v884
          %v886 = vpop.f32.mrb[0].mxu0
          %887 = vdwg.mxu0
          %v888 = vld [vmem:[%s5] sm:$0x1]
          %v890 = vlaneseq
          %v891 = vshrl.u32 %v890, 7
          %v892 = vsub.s32 0, %v891
          %v893 = vrot.slane %v888, %v892
          %v895 = vadd.f32 %v850, %v893
          %v896 = vadd.f32 %v855, %v893
          %v897 = vadd.f32 %v860, %v893
          %v898 = vadd.f32 %v865, %v893
          %v899 = vadd.f32 %v870, %v893
          %v900 = vadd.f32 %v875, %v893
          %v901 = vadd.f32 %v880, %v893
          %v902 = vadd.f32 %v885, %v893
          %v903 = vmax.f32 %v895, 0.0
          %v904 = vmax.f32 %v896, 0.0
          %v905 = vmax.f32 %v897, 0.0
          %v906 = vmax.f32 %v898, 0.0
          %v907 = vmax.f32 %v899, 0.0
          %v908 = vmax.f32 %v900, 0.0
          %v909 = vmax.f32 %v901, 0.0
          %v910 = vmax.f32 %v902, 0.0
          %911 = vst [vmem:[%s336] sm:$0xff] %v903
          %912 = vst [vmem:[%s336 + $0x8] sm:$0xff] %v904
          %913 = vst [vmem:[%s336 + $0x10] sm:$0xff] %v905
          %914 = vst [vmem:[%s336 + $0x18] sm:$0xff] %v906
          %915 = vst [vmem:[%s336 + $0x20] sm:$0xff] %v907
          %916 = vst [vmem:[%s336 + $0x28] sm:$0xff] %v908
          %917 = vst [vmem:[%s336 + $0x30] sm:$0xff] %v909
          %918 = vst [vmem:[%s336 + $0x38] sm:$0xff] %v910
        $region90: #{tpu_custom_call.1} parent=77 // pred_fallthru
          _
        %s919 = sand.u32 %s183, 1
        %s920 = scalar_lea.sflag [#allocation5], %s919
        %s921 = sand.u32 %s183, 1
        %s922 = smul.addr %s921, 64
        %s923 = scalar_lea.vmem [#allocation4], %s922
        // Predicated region
        $region91: #{tpu_custom_call.1} parent=77 // pred_check
          %p924 = pneg %p193
        $region92: #{tpu_custom_call.1} parent=77 // pred_check_branch
          %926 = sbr.rel (%p924) target = $region94
        $region93: #{tpu_custom_call.1} parent=77 // pred_region
          %s927 = smul.u32 8, %s24
          %s929 = ssub.s32 1024, 1024
          %930 = vsyncadd %s920, %s929
          %s931 = smul.addr %s927, 128
          %s932 = scalar_lea.hbm %s6, %s931
          %s933 = sshll.u32 %s923, 4
          %s934 = int_to_ptr.vmem [resolvable:$true] %s933
          %939 = dma.vmem_to_hbm [thread:$0]  %s934, 1024, %s932, %s920, 128, 128, 8
        $region94: #{tpu_custom_call.1} parent=77 // pred_fallthru
          _
      $region78: #{tpu_custom_call.1} parent=5 // pred_fallthru
        _
      %p940 = scmp.le.s32.totalorder 2, %s15
      // Predicated region
      $region95: #{tpu_custom_call.1} parent=5 // pred_check
        %p941 = pneg %p940
      $region96: #{tpu_custom_call.1} parent=5 // pred_check_branch
        %943 = sbr.rel (%p941) target = $region98
      $region97: #{tpu_custom_call.1} parent=5 // pred_region
        %s944 = ssub.s32 %s15, 2
        // Predicated region
        $region99: #{tpu_custom_call.1} parent=97 // pred_check
          %p945 = pneg %p199
        $region100: #{tpu_custom_call.1} parent=97 // pred_check_branch
          %947 = sbr.rel (%p945) target = $region102
        $region101: #{tpu_custom_call.1} parent=97 // pred_region
          %s948 = sand.u32 %s184, 1
          %s949 = scalar_lea.sflag [#allocation5], %s948
          %s950 = sand.u32 %s184, 1
          %s951 = smul.addr %s950, 64
          %s952 = scalar_lea.vmem [#allocation4], %s951
          %953 = dma.done %s949, 1024
        $region102: #{tpu_custom_call.1} parent=97 // pred_fallthru
          _
      $region98: #{tpu_custom_call.1} parent=5 // pred_fallthru
        _
    $region6: #{tpu_custom_call.1} parent=1 // loop_footer
      %s19 = sadd.s32 1, %s15
    $region7: #{tpu_custom_call.1} parent=1 // loop_footer_branch
      %14 = sbr.rel target = $region3
    $region8: #{tpu_custom_call.1} parent=1 // loop_exit
      _
    %954 = vsyncpa [#allocation5], 1
    %s955 = scalar_lea.sflag [#allocation5], 1
    %956 = vsyncpa %s955, 1

</llo_original>
